<compile_context>
chip_gen: v6e
topology: v6e:2x2x1
jax: 0.10.0
libtpu: 0.0.40
codegen_flags: <defaults>
</compile_context>

<pallas_src>
import jax
import jax.numpy as jnp
from jax.experimental import pallas as pl
from jax.experimental.pallas import tpu as pltpu


def _round_up(x, m):
    return ((x + m - 1) // m) * m


def qnet_kernel(x_ref, wp_ref, bp_ref, out_ref):
    """Fused MLP: relu(x@W1+b1) -> relu(@W2+b2) -> relu(@W3+b3) -> @W4+b4.

    x_ref  : (TB, state_size) activations for this batch tile.
    wp_ref : (4, PAD, PAD) zero-padded weights, layer i at wp_ref[i].
    bp_ref : (4, PAD) zero-padded biases (always f32).
    Activations are kept PAD lanes wide; padded lanes remain exactly 0
    because the padded weight columns and biases are 0.
    """
    wdt = wp_ref.dtype
    s = x_ref.shape[1]                       # real state_size (static)
    x = x_ref[...]

    # Layer 1: only the first `s` rows of W1 are real; static slice is free.
    h = jnp.dot(x, wp_ref[0, :s, :], preferred_element_type=jnp.float32)
    h = jnp.maximum(h + bp_ref[0:1, :], 0.0)          # bias-add / ReLU in f32

    h = jnp.dot(h.astype(wdt), wp_ref[1], preferred_element_type=jnp.float32)
    h = jnp.maximum(h + bp_ref[1:2, :], 0.0)

    h = jnp.dot(h.astype(wdt), wp_ref[2], preferred_element_type=jnp.float32)
    h = jnp.maximum(h + bp_ref[2:3, :], 0.0)

    h = jnp.dot(h.astype(wdt), wp_ref[3], preferred_element_type=jnp.float32)
    h = h + bp_ref[3:4, :]

    out_ref[...] = h.astype(out_ref.dtype)


def qnetwork_forward(x, w_packed, b_packed, action_size, tile_batch=512):
    """Fused QNetwork forward pass. Returns (B, action_size) float32."""
    B, S = x.shape
    PAD = b_packed.shape[1]
    wdt = w_packed.dtype

    # Batch tile: multiple of 16 rows (sublane-safe for f32 and bf16),
    # capped at `tile_batch` (512 rows f32 ~ 32 KB in, 256 KB out: trivially
    # within the 32 MiB scoped VMEM default on v5e/v6e/v7x even double-buffered).
    TB = _round_up(min(tile_batch, _round_up(B, 16)), 16)
    num_tiles = pl.cdiv(B, TB)
    B_pad = num_tiles * TB

    x = x.astype(wdt)
    if B_pad != B:
        x = jnp.pad(x, ((0, B_pad - B), (0, 0)))      # tail tile padded with zeros

    out = pl.pallas_call(
        qnet_kernel,
        out_shape=jax.ShapeDtypeStruct((B_pad, PAD), jnp.float32),
        grid=(num_tiles,),
        in_specs=[
            pl.BlockSpec((TB, S), lambda i: (i, 0)),            # batch-tiled states
            pl.BlockSpec(w_packed.shape, lambda i: (0, 0, 0)),  # VMEM-resident weights
            pl.BlockSpec(b_packed.shape, lambda i: (0, 0)),     # VMEM-resident biases
        ],
        out_specs=pl.BlockSpec((TB, PAD), lambda i: (i, 0)),    # lane-dense (PAD=128)
        compiler_params=pltpu.CompilerParams(
            dimension_semantics=("parallel",)),                 # megacore split on v7x
    )(x, w_packed, b_packed)

    return out[:B, :action_size]


def init_params(key, state_size, action_size,
                fc1_units=128, fc2_units=64, fc3_units=16):
    """Init mimicking PyTorch nn.Linear default (U[-1/sqrt(fan_in), +1/sqrt(fan_in)]).

    Weights stored transposed as (in, out) so the kernel computes y = x @ W + b.
    """
    dims = [(state_size, fc1_units), (fc1_units, fc2_units),
            (fc2_units, fc3_units), (fc3_units, action_size)]
    params = {}
    for i, (fan_in, fan_out) in enumerate(dims, start=1):
        key, kw, kb = jax.random.split(key, 3)
        bound = 1.0 / jnp.sqrt(fan_in)
        params[f"w{i}"] = jax.random.uniform(
            kw, (fan_in, fan_out), jnp.float32, -bound, bound)
        params[f"b{i}"] = jax.random.uniform(
            kb, (1, fan_out), jnp.float32, -bound, bound)
    return params


def pack_params(params, dtype=jnp.float32):
    """Pack the 4 weights/biases into single zero-padded buffers (done once).

    Weights -> (4, PAD, PAD) in `dtype` (f32 or bf16); biases -> (4, PAD) f32.
    PAD is every feature dim rounded up to a 128-lane multiple.
    """
    ws = [params[f"w{i}"] for i in range(1, 5)]
    bs = [params[f"b{i}"] for i in range(1, 5)]
    PAD = _round_up(max(max(w.shape) for w in ws), 128)
    wp = jnp.zeros((4, PAD, PAD), dtype)
    bp = jnp.zeros((4, PAD), jnp.float32)
    for i, (w, b) in enumerate(zip(ws, bs)):
        wp = wp.at[i, :w.shape[0], :w.shape[1]].set(w.astype(dtype))
        bp = bp.at[i, :w.shape[1]].set(b.reshape(-1).astype(jnp.float32))
    return wp, bp


def reference_forward(x, params):
    """Pure-JAX reference for correctness check."""
    h = jnp.maximum(x @ params["w1"] + params["b1"], 0.0)
    h = jnp.maximum(h @ params["w2"] + params["b2"], 0.0)
    h = jnp.maximum(h @ params["w3"] + params["b3"], 0.0)
    return h @ params["w4"] + params["b4"]


if __name__ == "__main__":
    state_size, action_size = 16, 4

    key = jax.random.PRNGKey(0)
    key, kx_small, kx_big = jax.random.split(key, 3)
    params = init_params(key, state_size, action_size)

    # jit the wrapper so params stay device-resident across calls.
    fwd = jax.jit(qnetwork_forward, static_argnames=("action_size", "tile_batch"))

    # ---- f32, small batch (latency path, single grid step) ----
    wp, bp = pack_params(params, jnp.float32)
    x_small = jax.random.normal(kx_small, (8, state_size), jnp.float32)
    out = jax.block_until_ready(fwd(x_small, wp, bp, action_size))
    ref = reference_forward(x_small, params)
    assert out.shape == (8, action_size)
    assert jnp.allclose(out, ref, atol=1e-5, rtol=1e-5), "f32 small-batch mismatch"

    # ---- f32, larger non-multiple batch (exercises batch grid + tail pad) ----
    x_big = jax.random.normal(kx_big, (1000, state_size), jnp.float32)
    out_big = jax.block_until_ready(fwd(x_big, wp, bp, action_size))
    ref_big = reference_forward(x_big, params)
    assert out_big.shape == (1000, action_size)
    assert jnp.allclose(out_big, ref_big, atol=1e-5, rtol=1e-5), "f32 big-batch mismatch"

    # ---- bf16 weights/activations (MXU-native on v6e/v7x), f32 accumulate ----
    wp16, bp16 = pack_params(params, jnp.bfloat16)
    out_bf16 = jax.block_until_ready(fwd(x_big, wp16, bp16, action_size))
    assert out_bf16.shape == (1000, action_size)
    assert jnp.allclose(out_bf16, ref_big, atol=1e-1, rtol=1e-1), "bf16 mismatch"

    print("KERNEL_OK")
</pallas_src>

<mosaic_0001>
module attributes {stable_mosaic.version = 11 : i64} {
  func.func @qnet_kernel(%arg0: i32, %arg1: memref<16x16xf32, #tpu.memory_space<vmem>>, %arg2: memref<4x128x128xf32, #tpu.memory_space<vmem>>, %arg3: memref<4x128xf32, #tpu.memory_space<vmem>>, %arg4: memref<16x128xf32, #tpu.memory_space<vmem>>) attributes {dimension_semantics = [#tpu.dimension_semantics<parallel>], iteration_bounds = array<i64: 1>, scalar_prefetch = 0 : i64, scratch_operands = 0 : i64, tpu.core_type = #tpu.core_type<tc>, window_params = [{transform_indices = @transform_0, window_bounds = array<i64: 16, 16>}, {pipeline_mode = #tpu.pipeline_mode<synchronous>, transform_indices = @transform_1, window_bounds = array<i64: 4, 128, 128>}, {pipeline_mode = #tpu.pipeline_mode<synchronous>, transform_indices = @transform_2, window_bounds = array<i64: 4, 128>}, {transform_indices = @transform_3, window_bounds = array<i64: 16, 128>}]} {
    %c0 = arith.constant 0 : index
    %c0_0 = arith.constant 0 : index
    %0 = vector.load %arg1[%c0, %c0_0] : memref<16x16xf32, #tpu.memory_space<vmem>>, vector<16x16xf32>
    %c0_1 = arith.constant 0 : index
    %c0_2 = arith.constant 0 : index
    %c0_3 = arith.constant 0 : index
    %1 = vector.load %arg2[%c0_1, %c0_2, %c0_3] : memref<4x128x128xf32, #tpu.memory_space<vmem>>, vector<1x16x128xf32>
    %2 = vector.shape_cast %1 : vector<1x16x128xf32> to vector<16x128xf32>
    %cst = arith.constant dense<0.000000e+00> : vector<16x128xf32>
    %3 = tpu.matmul %0, %2, %cst {dimension_numbers = #tpu.dot_dimension_numbers<[1], [0], [0], [1], [0, 0, 1, 1], [], []>} : vector<16x16xf32>, vector<16x128xf32>, vector<16x128xf32> -> vector<16x128xf32>
    %c0_4 = arith.constant 0 : index
    %c0_5 = arith.constant 0 : index
    %4 = vector.load %arg3[%c0_4, %c0_5] : memref<4x128xf32, #tpu.memory_space<vmem>>, vector<1x128xf32>
    %5 = vector.broadcast %4 : vector<1x128xf32> to vector<16x128xf32>
    %6 = arith.addf %3, %5 : vector<16x128xf32>
    %cst_6 = arith.constant 0.000000e+00 : f32
    %7 = vector.broadcast %cst_6 : f32 to vector<16x128xf32>
    %8 = arith.maximumf %6, %7 : vector<16x128xf32>
    %c1 = arith.constant 1 : index
    %c0_7 = arith.constant 0 : index
    %c0_8 = arith.constant 0 : index
    %9 = vector.load %arg2[%c1, %c0_7, %c0_8] : memref<4x128x128xf32, #tpu.memory_space<vmem>>, vector<1x128x128xf32>
    %10 = vector.shape_cast %9 : vector<1x128x128xf32> to vector<128x128xf32>
    %cst_9 = arith.constant dense<0.000000e+00> : vector<16x128xf32>
    %11 = tpu.matmul %8, %10, %cst_9 {dimension_numbers = #tpu.dot_dimension_numbers<[1], [0], [0], [1], [0, 0, 1, 1], [], []>} : vector<16x128xf32>, vector<128x128xf32>, vector<16x128xf32> -> vector<16x128xf32>
    %c1_10 = arith.constant 1 : index
    %c0_11 = arith.constant 0 : index
    %12 = vector.load %arg3[%c1_10, %c0_11] : memref<4x128xf32, #tpu.memory_space<vmem>>, vector<1x128xf32>
    %13 = vector.broadcast %12 : vector<1x128xf32> to vector<16x128xf32>
    %14 = arith.addf %11, %13 : vector<16x128xf32>
    %cst_12 = arith.constant 0.000000e+00 : f32
    %15 = vector.broadcast %cst_12 : f32 to vector<16x128xf32>
    %16 = arith.maximumf %14, %15 : vector<16x128xf32>
    %c2 = arith.constant 2 : index
    %c0_13 = arith.constant 0 : index
    %c0_14 = arith.constant 0 : index
    %17 = vector.load %arg2[%c2, %c0_13, %c0_14] : memref<4x128x128xf32, #tpu.memory_space<vmem>>, vector<1x128x128xf32>
    %18 = vector.shape_cast %17 : vector<1x128x128xf32> to vector<128x128xf32>
    %cst_15 = arith.constant dense<0.000000e+00> : vector<16x128xf32>
    %19 = tpu.matmul %16, %18, %cst_15 {dimension_numbers = #tpu.dot_dimension_numbers<[1], [0], [0], [1], [0, 0, 1, 1], [], []>} : vector<16x128xf32>, vector<128x128xf32>, vector<16x128xf32> -> vector<16x128xf32>
    %c2_16 = arith.constant 2 : index
    %c0_17 = arith.constant 0 : index
    %20 = vector.load %arg3[%c2_16, %c0_17] : memref<4x128xf32, #tpu.memory_space<vmem>>, vector<1x128xf32>
    %21 = vector.broadcast %20 : vector<1x128xf32> to vector<16x128xf32>
    %22 = arith.addf %19, %21 : vector<16x128xf32>
    %cst_18 = arith.constant 0.000000e+00 : f32
    %23 = vector.broadcast %cst_18 : f32 to vector<16x128xf32>
    %24 = arith.maximumf %22, %23 : vector<16x128xf32>
    %c3 = arith.constant 3 : index
    %c0_19 = arith.constant 0 : index
    %c0_20 = arith.constant 0 : index
    %25 = vector.load %arg2[%c3, %c0_19, %c0_20] : memref<4x128x128xf32, #tpu.memory_space<vmem>>, vector<1x128x128xf32>
    %26 = vector.shape_cast %25 : vector<1x128x128xf32> to vector<128x128xf32>
    %cst_21 = arith.constant dense<0.000000e+00> : vector<16x128xf32>
    %27 = tpu.matmul %24, %26, %cst_21 {dimension_numbers = #tpu.dot_dimension_numbers<[1], [0], [0], [1], [0, 0, 1, 1], [], []>} : vector<16x128xf32>, vector<128x128xf32>, vector<16x128xf32> -> vector<16x128xf32>
    %c3_22 = arith.constant 3 : index
    %c0_23 = arith.constant 0 : index
    %28 = vector.load %arg3[%c3_22, %c0_23] : memref<4x128xf32, #tpu.memory_space<vmem>>, vector<1x128xf32>
    %29 = vector.broadcast %28 : vector<1x128xf32> to vector<16x128xf32>
    %30 = arith.addf %27, %29 : vector<16x128xf32>
    %c0_24 = arith.constant 0 : index
    %c0_25 = arith.constant 0 : index
    %31 = vector.load %arg4[%c0_24, %c0_25] : memref<16x128xf32, #tpu.memory_space<vmem>>, vector<16x128xf32>
    tpu.vector_store %arg4[%c0_24, %c0_25], %30 {strides = array<i32>} : memref<16x128xf32, #tpu.memory_space<vmem>>, vector<16x128xf32>,
    return
  }
  func.func @transform_0(%arg0: i32) -> (i32, i32) {
    %c0_i32 = arith.constant 0 : i32
    %c0_i32_0 = arith.constant 0 : i32
    return %arg0, %c0_i32 : i32, i32
  }
  func.func @transform_1(%arg0: i32) -> (i32, i32, i32) {
    %c0_i32 = arith.constant 0 : i32
    %c0_i32_0 = arith.constant 0 : i32
    %c0_i32_1 = arith.constant 0 : i32
    %c0_i32_2 = arith.constant 0 : i32
    return %c0_i32, %c0_i32_0, %c0_i32_1 : i32, i32, i32
  }
  func.func @transform_2(%arg0: i32) -> (i32, i32) {
    %c0_i32 = arith.constant 0 : i32
    %c0_i32_0 = arith.constant 0 : i32
    %c0_i32_1 = arith.constant 0 : i32
    return %c0_i32, %c0_i32_0 : i32, i32
  }
  func.func @transform_3(%arg0: i32) -> (i32, i32) {
    %c0_i32 = arith.constant 0 : i32
    %c0_i32_0 = arith.constant 0 : i32
    return %arg0, %c0_i32 : i32, i32
  }
}

</mosaic_0001>

<llo_original>
// kernel: qnetwork_forward.1
$region0: #{qnetwork_forward.1}
  #allocation0 [shape = 'u32[]', space=smem, size = 0x4, offset = 0x4, fixed_abs, tag = 'smem constant byte address 0x4 - core index']
  #allocation1 [shape = 'u32[144,128]{1,0:T(1,128)}', space=vmem, size = 0x12000, scoped, tag = 'internal scratch']
  %s0 = inlined_call_operand.vmem [shape: f32[16,16], index: 0, kind: input, shape index: {}]
  %s1 = inlined_call_operand.hbm [shape: f32[4,128,128], index: 1, kind: input, shape index: {}]
  %s2 = inlined_call_operand.vmem [shape: f32[4,128], index: 2, kind: input, shape index: {}]
  %s3 = inlined_call_operand.vmem [shape: f32[16,128], index: 3, kind: output, shape index: {}]
  %s4 = sld [smem:[#allocation0]]
  $region26: #{qnetwork_forward.1} parent=0
    _
  %s6 = ssub.s32 1, %s4
  %s7 = scalar_select 0, %s6, %s4
  $region1: #{qnetwork_forward.1} parent=0
    #allocation2 [shape = 'u8[262144]{0}', space=vmem, size = 0x40000, scoped, tag = 'input window, operand 1, single buffered']
    #allocation3 [shape = 's32[1]{0}', space=sflag, size = 0x4, scoped, tag = 'scoped memory for qnetwork_forward.1']
    %8 = vsyncpa [#allocation3], 0
    // Predicated region
    $region2: #{qnetwork_forward.1} parent=1 // pred_check
      _
    $region3: #{qnetwork_forward.1} parent=1 // pred_check_branch
      %10 = sbr.rel (0) target = $region5
    $region4: #{qnetwork_forward.1} parent=1 // pred_region
      _
    $region5: #{qnetwork_forward.1} parent=1 // pred_fallthru
      _
    // Predicated region
    $region6: #{qnetwork_forward.1} parent=1 // pred_check
      _
    $region7: #{qnetwork_forward.1} parent=1 // pred_check_branch
      %12 = sbr.rel (0) target = $region9
    $region8: #{qnetwork_forward.1} parent=1 // pred_region
      %s14 = ssub.s32 8192, 8192
      %15 = vsyncadd [#allocation3], %s14
      %s16 = sshll.u32 [#allocation2], 4
      %s17 = int_to_ptr.vmem [resolvable:$true] %s16
      %22 = dma.hbm_to_vmem [thread:$0]  %s1, 8192, %s17, [#allocation3], 128, 128, 8
    $region9: #{qnetwork_forward.1} parent=1 // pred_fallthru
      _
    // Predicated region
    $region10: #{qnetwork_forward.1} parent=1 // pred_check
      _
    $region11: #{qnetwork_forward.1} parent=1 // pred_check_branch
      %24 = sbr.rel (0) target = $region13
    $region12: #{qnetwork_forward.1} parent=1 // pred_region
      _
    $region13: #{qnetwork_forward.1} parent=1 // pred_fallthru
      _
    // Predicated region
    $region14: #{qnetwork_forward.1} parent=1 // pred_check
      _
    $region15: #{qnetwork_forward.1} parent=1 // pred_check_branch
      %26 = sbr.rel (0) target = $region17
    $region16: #{qnetwork_forward.1} parent=1 // pred_region
      %27 = dma.done [#allocation3], 8192
    $region17: #{qnetwork_forward.1} parent=1 // pred_fallthru
      _
    %v28 = vld [vmem:[%s0] sm:$0xff]
    %v29 = vld [vmem:[%s0 + $0x8] sm:$0xff]
    %v30 = vld [vmem:[#allocation2] sm:$0xff]
    %v31 = vld [vmem:[#allocation2 + $0x8] sm:$0xff]
    %v32 = vld [vmem:[%s2] sm:$0x1]
    %v33 = vlaneseq
    %v34 = vshrl.u32 %v33, 7
    %v35 = vsub.s32 0, %v34
    %v36 = vrot.slane %v32, %v35
    %vm37 = vcmask 130048
    %v39 = vsel %vm37, %v28, 0
    %v42 = vsel %vm37, %v29, 0
    %44 = vmatprep.subr.mxu0 0.0
    %45 = vmatpush1.msra.mxu0 0.0
    %46 = vmatprep.subr.mxu0 0.0
    %47 = vmatpush1.msra.mxu0 0.0
    %48 = vmatprep.subr.mxu0 0.0
    %49 = vmatpush1.msra.mxu0 0.0
    %50 = vmatprep.subr.mxu0 0.0
    %51 = vmatpush1.msra.mxu0 0.0
    %52 = vmatprep.subr.mxu0 0.0
    %53 = vmatpush1.msra.mxu0 0.0
    %54 = vmatprep.subr.mxu0 0.0
    %55 = vmatpush1.msra.mxu0 0.0
    %56 = vmatprep.subr.mxu0 0.0
    %57 = vmatpush1.msra.mxu0 0.0
    %58 = vmatprep.subr.mxu0 0.0
    %59 = vmatpush1.msra.mxu0 0.0
    %60 = vmatprep.subr.mxu0 0.0
    %61 = vmatpush1.msra.mxu0 0.0
    %62 = vmatprep.subr.mxu0 0.0
    %63 = vmatpush1.msra.mxu0 0.0
    %64 = vmatprep.subr.mxu0 0.0
    %65 = vmatpush1.msra.mxu0 0.0
    %66 = vmatprep.subr.mxu0 0.0
    %67 = vmatpush1.msra.mxu0 0.0
    %68 = vmatprep.subr.mxu0 0.0
    %69 = vmatpush1.msra.mxu0 0.0
    %70 = vmatprep.subr.mxu0 0.0
    %71 = vmatpush1.msra.mxu0 0.0
    %72 = vmatprep.subr.mxu0 0.0
    %73 = vmatpush1.msra.mxu0 %v31
    %74 = vmatprep.subr.mxu0 0.0
    %75 = vmatpush1.msra.mxu0 %v30
    %76 = vmatprep.subr.mxu0 0.0
    %77 = vmatpush2.msra.mxu0 0.0
    %78 = vmatprep.subr.mxu0 0.0
    %79 = vmatpush2.msra.mxu0 0.0
    %80 = vmatprep.subr.mxu0 0.0
    %81 = vmatpush2.msra.mxu0 0.0
    %82 = vmatprep.subr.mxu0 0.0
    %83 = vmatpush2.msra.mxu0 0.0
    %84 = vmatprep.subr.mxu0 0.0
    %85 = vmatpush2.msra.mxu0 0.0
    %86 = vmatprep.subr.mxu0 0.0
    %87 = vmatpush2.msra.mxu0 0.0
    %88 = vmatprep.subr.mxu0 0.0
    %89 = vmatpush2.msra.mxu0 0.0
    %90 = vmatprep.subr.mxu0 0.0
    %91 = vmatpush2.msra.mxu0 0.0
    %92 = vmatprep.subr.mxu0 0.0
    %93 = vmatpush2.msra.mxu0 0.0
    %94 = vmatprep.subr.mxu0 0.0
    %95 = vmatpush2.msra.mxu0 0.0
    %96 = vmatprep.subr.mxu0 0.0
    %97 = vmatpush2.msra.mxu0 0.0
    %98 = vmatprep.subr.mxu0 0.0
    %99 = vmatpush2.msra.mxu0 0.0
    %100 = vmatprep.subr.mxu0 0.0
    %101 = vmatpush2.msra.mxu0 0.0
    %102 = vmatprep.subr.mxu0 0.0
    %103 = vmatpush2.msra.mxu0 0.0
    %104 = vmatprep.subr.mxu0 0.0
    %105 = vmatpush2.msra.mxu0 0.0
    %106 = vmatprep.subr.mxu0 0.0
    %107 = vmatpush2.msra.mxu0 0.0
    %108 = vmatprep.mubr.f32.mxu0 0.0
    %109 = vmatmul.mubr.f32.gmra.mxu0 %v39
    %v110 = vpop.f32.mrf.mxu0
    %v111 = vadd.f32 %v36, %v110
    %v112 = vpop.f32.mrf.mxu0
    %113 = vmatprep.mubr.f32.mxu0 0.0
    %114 = vmatmul.mubr.f32.gmra.mxu0 %v42
    %v115 = vpop.f32.mrf.mxu0
    %v116 = vadd.f32 %v36, %v115
    %v117 = vpop.f32.mrf.mxu0
    %118 = vdwg.mxu0
    %v119 = vmax.f32 %v111, 0.0
    %v120 = vmax.f32 %v116, 0.0
    %s121 = scalar_lea.vmem [#allocation2], 128
    %v122 = vld [vmem:[%s121] sm:$0xff]
    %v123 = vld [vmem:[%s121 + $0x8] sm:$0xff]
    %v124 = vld [vmem:[%s121 + $0x10] sm:$0xff]
    %v125 = vld [vmem:[%s121 + $0x18] sm:$0xff]
    %v126 = vld [vmem:[%s121 + $0x20] sm:$0xff]
    %v127 = vld [vmem:[%s121 + $0x28] sm:$0xff]
    %v128 = vld [vmem:[%s121 + $0x30] sm:$0xff]
    %v129 = vld [vmem:[%s121 + $0x38] sm:$0xff]
    %v130 = vld [vmem:[%s121 + $0x40] sm:$0xff]
    %v131 = vld [vmem:[%s121 + $0x48] sm:$0xff]
    %v132 = vld [vmem:[%s121 + $0x50] sm:$0xff]
    %v133 = vld [vmem:[%s121 + $0x58] sm:$0xff]
    %v134 = vld [vmem:[%s121 + $0x60] sm:$0xff]
    %v135 = vld [vmem:[%s121 + $0x68] sm:$0xff]
    %v136 = vld [vmem:[%s121 + $0x70] sm:$0xff]
    %v137 = vld [vmem:[%s121 + $0x78] sm:$0xff]
    %v138 = vld [vmem:[%s2 + $0x1] sm:$0x1]
    %v139 = vlaneseq
    %v140 = vshrl.u32 %v139, 7
    %v141 = vsub.s32 0, %v140
    %v142 = vrot.slane %v138, %v141
    %143 = vmatprep.subr.mxu0 0.0
    %144 = vmatpush1.msra.mxu0 %v137
    %145 = vmatprep.subr.mxu0 0.0
    %146 = vmatpush1.msra.mxu0 %v136
    %147 = vmatprep.subr.mxu0 0.0
    %148 = vmatpush1.msra.mxu0 %v135
    %149 = vmatprep.subr.mxu0 0.0
    %150 = vmatpush1.msra.mxu0 %v134
    %151 = vmatprep.subr.mxu0 0.0
    %152 = vmatpush1.msra.mxu0 %v133
    %153 = vmatprep.subr.mxu0 0.0
    %154 = vmatpush1.msra.mxu0 %v132
    %155 = vmatprep.subr.mxu0 0.0
    %156 = vmatpush1.msra.mxu0 %v131
    %157 = vmatprep.subr.mxu0 0.0
    %158 = vmatpush1.msra.mxu0 %v130
    %159 = vmatprep.subr.mxu0 0.0
    %160 = vmatpush1.msra.mxu0 %v129
    %161 = vmatprep.subr.mxu0 0.0
    %162 = vmatpush1.msra.mxu0 %v128
    %163 = vmatprep.subr.mxu0 0.0
    %164 = vmatpush1.msra.mxu0 %v127
    %165 = vmatprep.subr.mxu0 0.0
    %166 = vmatpush1.msra.mxu0 %v126
    %167 = vmatprep.subr.mxu0 0.0
    %168 = vmatpush1.msra.mxu0 %v125
    %169 = vmatprep.subr.mxu0 0.0
    %170 = vmatpush1.msra.mxu0 %v124
    %171 = vmatprep.subr.mxu0 0.0
    %172 = vmatpush1.msra.mxu0 %v123
    %173 = vmatprep.subr.mxu0 0.0
    %174 = vmatpush1.msra.mxu0 %v122
    %175 = vmatprep.subr.mxu0 0.0
    %176 = vmatpush2.msra.mxu0 0.0
    %177 = vmatprep.subr.mxu0 0.0
    %178 = vmatpush2.msra.mxu0 0.0
    %179 = vmatprep.subr.mxu0 0.0
    %180 = vmatpush2.msra.mxu0 0.0
    %181 = vmatprep.subr.mxu0 0.0
    %182 = vmatpush2.msra.mxu0 0.0
    %183 = vmatprep.subr.mxu0 0.0
    %184 = vmatpush2.msra.mxu0 0.0
    %185 = vmatprep.subr.mxu0 0.0
    %186 = vmatpush2.msra.mxu0 0.0
    %187 = vmatprep.subr.mxu0 0.0
    %188 = vmatpush2.msra.mxu0 0.0
    %189 = vmatprep.subr.mxu0 0.0
    %190 = vmatpush2.msra.mxu0 0.0
    %191 = vmatprep.subr.mxu0 0.0
    %192 = vmatpush2.msra.mxu0 0.0
    %193 = vmatprep.subr.mxu0 0.0
    %194 = vmatpush2.msra.mxu0 0.0
    %195 = vmatprep.subr.mxu0 0.0
    %196 = vmatpush2.msra.mxu0 0.0
    %197 = vmatprep.subr.mxu0 0.0
    %198 = vmatpush2.msra.mxu0 0.0
    %199 = vmatprep.subr.mxu0 0.0
    %200 = vmatpush2.msra.mxu0 0.0
    %201 = vmatprep.subr.mxu0 0.0
    %202 = vmatpush2.msra.mxu0 0.0
    %203 = vmatprep.subr.mxu0 0.0
    %204 = vmatpush2.msra.mxu0 0.0
    %205 = vmatprep.subr.mxu0 0.0
    %206 = vmatpush2.msra.mxu0 0.0
    %207 = vmatprep.mubr.f32.mxu0 0.0
    %208 = vmatmul.mubr.f32.gmra.mxu0 %v119
    %v209 = vpop.f32.mrf.mxu0
    %v210 = vadd.f32 %v142, %v209
    %v211 = vpop.f32.mrf.mxu0
    %212 = vmatprep.mubr.f32.mxu0 0.0
    %213 = vmatmul.mubr.f32.gmra.mxu0 %v120
    %v214 = vpop.f32.mrf.mxu0
    %v215 = vadd.f32 %v142, %v214
    %v216 = vpop.f32.mrf.mxu0
    %217 = vdwg.mxu0
    %v218 = vmax.f32 %v210, 0.0
    %v219 = vmax.f32 %v215, 0.0
    %s220 = scalar_lea.vmem [#allocation2], 256
    %v221 = vld [vmem:[%s220] sm:$0xff]
    %v222 = vld [vmem:[%s220 + $0x8] sm:$0xff]
    %v223 = vld [vmem:[%s220 + $0x10] sm:$0xff]
    %v224 = vld [vmem:[%s220 + $0x18] sm:$0xff]
    %v225 = vld [vmem:[%s220 + $0x20] sm:$0xff]
    %v226 = vld [vmem:[%s220 + $0x28] sm:$0xff]
    %v227 = vld [vmem:[%s220 + $0x30] sm:$0xff]
    %v228 = vld [vmem:[%s220 + $0x38] sm:$0xff]
    %v229 = vld [vmem:[%s220 + $0x40] sm:$0xff]
    %v230 = vld [vmem:[%s220 + $0x48] sm:$0xff]
    %v231 = vld [vmem:[%s220 + $0x50] sm:$0xff]
    %v232 = vld [vmem:[%s220 + $0x58] sm:$0xff]
    %v233 = vld [vmem:[%s220 + $0x60] sm:$0xff]
    %v234 = vld [vmem:[%s220 + $0x68] sm:$0xff]
    %v235 = vld [vmem:[%s220 + $0x70] sm:$0xff]
    %v236 = vld [vmem:[%s220 + $0x78] sm:$0xff]
    %v237 = vld [vmem:[%s2 + $0x2] sm:$0x1]
    %v238 = vlaneseq
    %v239 = vshrl.u32 %v238, 7
    %v240 = vsub.s32 0, %v239
    %v241 = vrot.slane %v237, %v240
    %242 = vmatprep.subr.mxu0 0.0
    %243 = vmatpush1.msra.mxu0 %v236
    %244 = vmatprep.subr.mxu0 0.0
    %245 = vmatpush1.msra.mxu0 %v235
    %246 = vmatprep.subr.mxu0 0.0
    %247 = vmatpush1.msra.mxu0 %v234
    %248 = vmatprep.subr.mxu0 0.0
    %249 = vmatpush1.msra.mxu0 %v233
    %250 = vmatprep.subr.mxu0 0.0
    %251 = vmatpush1.msra.mxu0 %v232
    %252 = vmatprep.subr.mxu0 0.0
    %253 = vmatpush1.msra.mxu0 %v231
    %254 = vmatprep.subr.mxu0 0.0
    %255 = vmatpush1.msra.mxu0 %v230
    %256 = vmatprep.subr.mxu0 0.0
    %257 = vmatpush1.msra.mxu0 %v229
    %258 = vmatprep.subr.mxu0 0.0
    %259 = vmatpush1.msra.mxu0 %v228
    %260 = vmatprep.subr.mxu0 0.0
    %261 = vmatpush1.msra.mxu0 %v227
    %262 = vmatprep.subr.mxu0 0.0
    %263 = vmatpush1.msra.mxu0 %v226
    %264 = vmatprep.subr.mxu0 0.0
    %265 = vmatpush1.msra.mxu0 %v225
    %266 = vmatprep.subr.mxu0 0.0
    %267 = vmatpush1.msra.mxu0 %v224
    %268 = vmatprep.subr.mxu0 0.0
    %269 = vmatpush1.msra.mxu0 %v223
    %270 = vmatprep.subr.mxu0 0.0
    %271 = vmatpush1.msra.mxu0 %v222
    %272 = vmatprep.subr.mxu0 0.0
    %273 = vmatpush1.msra.mxu0 %v221
    %274 = vmatprep.subr.mxu0 0.0
    %275 = vmatpush2.msra.mxu0 0.0
    %276 = vmatprep.subr.mxu0 0.0
    %277 = vmatpush2.msra.mxu0 0.0
    %278 = vmatprep.subr.mxu0 0.0
    %279 = vmatpush2.msra.mxu0 0.0
    %280 = vmatprep.subr.mxu0 0.0
    %281 = vmatpush2.msra.mxu0 0.0
    %282 = vmatprep.subr.mxu0 0.0
    %283 = vmatpush2.msra.mxu0 0.0
    %284 = vmatprep.subr.mxu0 0.0
    %285 = vmatpush2.msra.mxu0 0.0
    %286 = vmatprep.subr.mxu0 0.0
    %287 = vmatpush2.msra.mxu0 0.0
    %288 = vmatprep.subr.mxu0 0.0
    %289 = vmatpush2.msra.mxu0 0.0
    %290 = vmatprep.subr.mxu0 0.0
    %291 = vmatpush2.msra.mxu0 0.0
    %292 = vmatprep.subr.mxu0 0.0
    %293 = vmatpush2.msra.mxu0 0.0
    %294 = vmatprep.subr.mxu0 0.0
    %295 = vmatpush2.msra.mxu0 0.0
    %296 = vmatprep.subr.mxu0 0.0
    %297 = vmatpush2.msra.mxu0 0.0
    %298 = vmatprep.subr.mxu0 0.0
    %299 = vmatpush2.msra.mxu0 0.0
    %300 = vmatprep.subr.mxu0 0.0
    %301 = vmatpush2.msra.mxu0 0.0
    %302 = vmatprep.subr.mxu0 0.0
    %303 = vmatpush2.msra.mxu0 0.0
    %304 = vmatprep.subr.mxu0 0.0
    %305 = vmatpush2.msra.mxu0 0.0
    %306 = vmatprep.mubr.f32.mxu0 0.0
    %307 = vmatmul.mubr.f32.gmra.mxu0 %v218
    %v308 = vpop.f32.mrf.mxu0
    %v309 = vadd.f32 %v241, %v308
    %v310 = vpop.f32.mrf.mxu0
    %311 = vmatprep.mubr.f32.mxu0 0.0
    %312 = vmatmul.mubr.f32.gmra.mxu0 %v219
    %v313 = vpop.f32.mrf.mxu0
    %v314 = vadd.f32 %v241, %v313
    %v315 = vpop.f32.mrf.mxu0
    %316 = vdwg.mxu0
    %v317 = vmax.f32 %v309, 0.0
    %v318 = vmax.f32 %v314, 0.0
    %s319 = scalar_lea.vmem [#allocation2], 384
    %v320 = vld [vmem:[%s319] sm:$0xff]
    %v321 = vld [vmem:[%s319 + $0x8] sm:$0xff]
    %v322 = vld [vmem:[%s319 + $0x10] sm:$0xff]
    %v323 = vld [vmem:[%s319 + $0x18] sm:$0xff]
    %v324 = vld [vmem:[%s319 + $0x20] sm:$0xff]
    %v325 = vld [vmem:[%s319 + $0x28] sm:$0xff]
    %v326 = vld [vmem:[%s319 + $0x30] sm:$0xff]
    %v327 = vld [vmem:[%s319 + $0x38] sm:$0xff]
    %v328 = vld [vmem:[%s319 + $0x40] sm:$0xff]
    %v329 = vld [vmem:[%s319 + $0x48] sm:$0xff]
    %v330 = vld [vmem:[%s319 + $0x50] sm:$0xff]
    %v331 = vld [vmem:[%s319 + $0x58] sm:$0xff]
    %v332 = vld [vmem:[%s319 + $0x60] sm:$0xff]
    %v333 = vld [vmem:[%s319 + $0x68] sm:$0xff]
    %v334 = vld [vmem:[%s319 + $0x70] sm:$0xff]
    %v335 = vld [vmem:[%s319 + $0x78] sm:$0xff]
    %v336 = vld [vmem:[%s2 + $0x3] sm:$0x1]
    %v337 = vlaneseq
    %v338 = vshrl.u32 %v337, 7
    %v339 = vsub.s32 0, %v338
    %v340 = vrot.slane %v336, %v339
    %341 = vmatprep.subr.mxu0 0.0
    %342 = vmatpush1.msra.mxu0 %v335
    %343 = vmatprep.subr.mxu0 0.0
    %344 = vmatpush1.msra.mxu0 %v334
    %345 = vmatprep.subr.mxu0 0.0
    %346 = vmatpush1.msra.mxu0 %v333
    %347 = vmatprep.subr.mxu0 0.0
    %348 = vmatpush1.msra.mxu0 %v332
    %349 = vmatprep.subr.mxu0 0.0
    %350 = vmatpush1.msra.mxu0 %v331
    %351 = vmatprep.subr.mxu0 0.0
    %352 = vmatpush1.msra.mxu0 %v330
    %353 = vmatprep.subr.mxu0 0.0
    %354 = vmatpush1.msra.mxu0 %v329
    %355 = vmatprep.subr.mxu0 0.0
    %356 = vmatpush1.msra.mxu0 %v328
    %357 = vmatprep.subr.mxu0 0.0
    %358 = vmatpush1.msra.mxu0 %v327
    %359 = vmatprep.subr.mxu0 0.0
    %360 = vmatpush1.msra.mxu0 %v326
    %361 = vmatprep.subr.mxu0 0.0
    %362 = vmatpush1.msra.mxu0 %v325
    %363 = vmatprep.subr.mxu0 0.0
    %364 = vmatpush1.msra.mxu0 %v324
    %365 = vmatprep.subr.mxu0 0.0
    %366 = vmatpush1.msra.mxu0 %v323
    %367 = vmatprep.subr.mxu0 0.0
    %368 = vmatpush1.msra.mxu0 %v322
    %369 = vmatprep.subr.mxu0 0.0
    %370 = vmatpush1.msra.mxu0 %v321
    %371 = vmatprep.subr.mxu0 0.0
    %372 = vmatpush1.msra.mxu0 %v320
    %373 = vmatprep.subr.mxu0 0.0
    %374 = vmatpush2.msra.mxu0 0.0
    %375 = vmatprep.subr.mxu0 0.0
    %376 = vmatpush2.msra.mxu0 0.0
    %377 = vmatprep.subr.mxu0 0.0
    %378 = vmatpush2.msra.mxu0 0.0
    %379 = vmatprep.subr.mxu0 0.0
    %380 = vmatpush2.msra.mxu0 0.0
    %381 = vmatprep.subr.mxu0 0.0
    %382 = vmatpush2.msra.mxu0 0.0
    %383 = vmatprep.subr.mxu0 0.0
    %384 = vmatpush2.msra.mxu0 0.0
    %385 = vmatprep.subr.mxu0 0.0
    %386 = vmatpush2.msra.mxu0 0.0
    %387 = vmatprep.subr.mxu0 0.0
    %388 = vmatpush2.msra.mxu0 0.0
    %389 = vmatprep.subr.mxu0 0.0
    %390 = vmatpush2.msra.mxu0 0.0
    %391 = vmatprep.subr.mxu0 0.0
    %392 = vmatpush2.msra.mxu0 0.0
    %393 = vmatprep.subr.mxu0 0.0
    %394 = vmatpush2.msra.mxu0 0.0
    %395 = vmatprep.subr.mxu0 0.0
    %396 = vmatpush2.msra.mxu0 0.0
    %397 = vmatprep.subr.mxu0 0.0
    %398 = vmatpush2.msra.mxu0 0.0
    %399 = vmatprep.subr.mxu0 0.0
    %400 = vmatpush2.msra.mxu0 0.0
    %401 = vmatprep.subr.mxu0 0.0
    %402 = vmatpush2.msra.mxu0 0.0
    %403 = vmatprep.subr.mxu0 0.0
    %404 = vmatpush2.msra.mxu0 0.0
    %405 = vmatprep.mubr.f32.mxu0 0.0
    %406 = vmatmul.mubr.f32.gmra.mxu0 %v317
    %v407 = vpop.f32.mrf.mxu0
    %v408 = vadd.f32 %v340, %v407
    %v409 = vpop.f32.mrf.mxu0
    %410 = vmatprep.mubr.f32.mxu0 0.0
    %411 = vmatmul.mubr.f32.gmra.mxu0 %v318
    %v412 = vpop.f32.mrf.mxu0
    %v413 = vadd.f32 %v340, %v412
    %v414 = vpop.f32.mrf.mxu0
    %415 = vdwg.mxu0
    %416 = vst [vmem:[%s3] sm:$0xff] %v408
    %417 = vst [vmem:[%s3 + $0x8] sm:$0xff] %v413
    // Predicated region
    $region18: #{qnetwork_forward.1} parent=1 // pred_check
      _
    $region19: #{qnetwork_forward.1} parent=1 // pred_check_branch
      %419 = sbr.rel (0) target = $region21
    $region20: #{qnetwork_forward.1} parent=1 // pred_region
      _
    $region21: #{qnetwork_forward.1} parent=1 // pred_fallthru
      _
    // Predicated region
    $region22: #{qnetwork_forward.1} parent=1 // pred_check
      _
    $region23: #{qnetwork_forward.1} parent=1 // pred_check_branch
      %421 = sbr.rel (0) target = $region25
    $region24: #{qnetwork_forward.1} parent=1 // pred_region
      _
    $region25: #{qnetwork_forward.1} parent=1 // pred_fallthru
      _
    %422 = vsyncpa [#allocation3], 1

</llo_original>
